<compile_context>
chip_gen: v7x
topology: tpu7x:2x2x1
jax: 0.10.0
libtpu: 0.0.40
codegen_flags: <defaults>
</compile_context>

<pallas_src>
import jax
import jax.numpy as jnp
from jax.experimental import pallas as pl
from jax.experimental.pallas import tpu as pltpu


def _pos_embed_kernel(wpe_ref, out_ref):
    # wpe_ref: (st, D) positional-embedding rows for this sequence tile
    # out_ref: (bt, st, D) output slab covering bt batch rows
    out_ref[...] = jnp.broadcast_to(wpe_ref[...][None, :, :], out_ref.shape)


def _num_tensorcores() -> int:
    """Best-effort TensorCores-per-chip (2 on v7x, 1 on v5e/v6e)."""
    try:
        kind = jax.devices()[0].device_kind.lower()
    except Exception:
        return 1
    return 2 if "v7" in kind else 1


def _round_up(x: int, m: int) -> int:
    return -(-x // m) * m


def pos_embed(
    tokens: jax.Array,
    wpe: jax.Array,
    *,
    target_tile_bytes: int = 8 * 1024 * 1024,  # ~8 MiB writeback DMAs
) -> jax.Array:
    """Pallas implementation of PosEmbed.forward.

    tokens: int array [B, S] (only its shape is used)
    wpe:    float array [n_ctx, d_embd]
    returns float array [B, S, d_embd] with out[b] == wpe[:S]
    """
    B, S = tokens.shape
    n_ctx, D = wpe.shape
    assert S <= n_ctx, f"sequence length {S} exceeds n_ctx {n_ctx}"

    # Slice outside the kernel so blocks can equal full array extents.
    wpe_s = wpe[:S]

    itemsize = jnp.dtype(wpe.dtype).itemsize
    row_bytes = max(S * D * itemsize, 1)  # bytes of one (1, S, D) batch row
    total_bytes = B * row_bytes
    num_tc = _num_tensorcores()

    if row_bytes <= target_tile_bytes:
        # Whole (S, D) rows fit the tile budget: fold batch rows per step.
        st = S
        bt = max(1, min(B, target_tile_bytes // row_bytes))
        # Dual-TensorCore chips only (v7x): make sure both cores get work, but
        # only when the output is large enough that splitting the slab pays.
        if num_tc > 1 and total_bytes >= 2 * 1024 * 1024:
            if B >= num_tc:
                if pl.cdiv(B, bt) < num_tc:
                    bt = pl.cdiv(B, num_tc)
            elif S > 8:
                # B == 1: split the single row along S so both cores issue DMAs.
                st_split = _round_up(pl.cdiv(S, num_tc), 8)
                if st_split < S:
                    st = st_split
    else:
        # A single batch row exceeds the budget: tile the sequence axis in
        # multiples of 8 rows so blocks always fit VMEM (incl. v7x 64 MiB).
        bt = 1
        st = max(8, (target_tile_bytes // (D * itemsize)) // 8 * 8)
        st = min(st, S)

    nb = pl.cdiv(B, bt)
    ns = pl.cdiv(S, st)

    # Derive the VMEM limit from actual buffer sizes (output double-buffer +
    # up to two wpe buffers + slack), instead of a flat constant.
    out_tile_bytes = bt * st * D * itemsize
    wpe_tile_bytes = st * D * itemsize
    needed = 2 * out_tile_bytes + 2 * wpe_tile_bytes + (4 << 20)
    vmem_limit = int(min(48 << 20, max(16 << 20, needed)))

    out_shape = jax.ShapeDtypeStruct((B, S, D), wpe.dtype)

    def call(single_buffer_wpe: bool):
        if single_buffer_wpe:
            # wpe block index is (near) constant -> single buffer frees VMEM.
            wpe_spec = pl.BlockSpec(
                (st, D), lambda b, s: (s, 0), pipeline_mode=pl.Buffered(1)
            )
        else:
            wpe_spec = pl.BlockSpec((st, D), lambda b, s: (s, 0))
        return pl.pallas_call(
            _pos_embed_kernel,
            out_shape=out_shape,
            grid_spec=pltpu.PrefetchScalarGridSpec(
                num_scalar_prefetch=0,
                grid=(nb, ns),
                in_specs=[wpe_spec],
                # Large contiguous batch/seq-folded slab per grid step.
                out_specs=pl.BlockSpec((bt, st, D), lambda b, s: (b, s, 0)),
            ),
            compiler_params=pltpu.CompilerParams(
                dimension_semantics=("parallel", "parallel"),
                vmem_limit_bytes=vmem_limit,
            ),
        )(wpe_s)

    try:
        return call(True)
    except Exception:
        # Fallback if this JAX build rejects pipeline_mode=pl.Buffered(1);
        # identical semantics, default double-buffered wpe input.
        return call(False)


if __name__ == "__main__":
    # Small, TPU-friendly config (stand-in for n_ctx=1024, d_embd=768).
    n_ctx = 64
    d_embd = 128
    initializer_range = 0.02
    batch = 2
    seq = 8

    key = jax.random.PRNGKey(0)
    k_wpe, k_tok = jax.random.split(key)

    # Deterministic init: normal(std=initializer_range), like nn.init.normal_.
    wpe = (initializer_range * jax.random.normal(k_wpe, (n_ctx, d_embd))).astype(
        jnp.float32
    )
    # Token ids — only their shape matters for this module.
    tokens = jax.random.randint(k_tok, (batch, seq), 0, 50257, dtype=jnp.int32)

    out = pos_embed(tokens, wpe)
    out = jax.block_until_ready(out)

    # Reference check: out[b] == wpe[:seq]
    ref = jnp.broadcast_to(wpe[:seq][None, :, :], (batch, seq, d_embd))
    assert out.shape == (batch, seq, d_embd)
    assert jnp.allclose(out, ref)

    print("KERNEL_OK")
</pallas_src>

<mosaic_0001>
module attributes {stable_mosaic.version = 11 : i64} {
  func.func @_pos_embed_kernel(%arg0: i32, %arg1: i32, %arg2: memref<8x128xf32, #tpu.memory_space<vmem>>, %arg3: memref<2x8x128xf32, #tpu.memory_space<vmem>>) attributes {dimension_semantics = [#tpu.dimension_semantics<parallel>, #tpu.dimension_semantics<parallel>], iteration_bounds = array<i64: 1, 1>, scalar_prefetch = 0 : i64, scratch_operands = 0 : i64, tpu.core_type = #tpu.core_type<tc>, window_params = [{pipeline_mode = #tpu.pipeline_mode<synchronous>, transform_indices = @transform_0, window_bounds = array<i64: 8, 128>}, {transform_indices = @transform_1, window_bounds = array<i64: 2, 8, 128>}]} {
    %c0 = arith.constant 0 : index
    %c0_0 = arith.constant 0 : index
    %0 = vector.load %arg2[%c0, %c0_0] : memref<8x128xf32, #tpu.memory_space<vmem>>, vector<8x128xf32>
    %1 = vector.shape_cast %0 : vector<8x128xf32> to vector<1x8x128xf32>
    %2 = vector.shape_cast %1 : vector<1x8x128xf32> to vector<1x8x128xf32>
    %3 = vector.broadcast %2 : vector<1x8x128xf32> to vector<2x8x128xf32>
    %c0_1 = arith.constant 0 : index
    %c0_2 = arith.constant 0 : index
    %c0_3 = arith.constant 0 : index
    %4 = vector.load %arg3[%c0_1, %c0_2, %c0_3] : memref<2x8x128xf32, #tpu.memory_space<vmem>>, vector<2x8x128xf32>
    tpu.vector_store %arg3[%c0_1, %c0_2, %c0_3], %3 {strides = array<i32>} : memref<2x8x128xf32, #tpu.memory_space<vmem>>, vector<2x8x128xf32>,
    return
  }
  func.func @transform_0(%arg0: i32, %arg1: i32) -> (i32, i32) {
    %c0_i32 = arith.constant 0 : i32
    %c0_i32_0 = arith.constant 0 : i32
    return %arg1, %c0_i32 : i32, i32
  }
  func.func @transform_1(%arg0: i32, %arg1: i32) -> (i32, i32, i32) {
    %c0_i32 = arith.constant 0 : i32
    %c0_i32_0 = arith.constant 0 : i32
    return %arg0, %arg1, %c0_i32 : i32, i32, i32
  }
}

module attributes {stable_mosaic.version = 11 : i64} {
  func.func @_pos_embed_kernel(%arg0: i32, %arg1: i32, %arg2: memref<8x128xf32, #tpu.memory_space<vmem>>, %arg3: memref<2x8x128xf32, #tpu.memory_space<vmem>>) attributes {dimension_semantics = [#tpu.dimension_semantics<parallel>, #tpu.dimension_semantics<parallel>], iteration_bounds = array<i64: 1, 1>, scalar_prefetch = 0 : i64, scratch_operands = 0 : i64, tpu.core_type = #tpu.core_type<tc>, window_params = [{transform_indices = @transform_0, window_bounds = array<i64: 8, 128>}, {transform_indices = @transform_1, window_bounds = array<i64: 2, 8, 128>}]} {
    %c0 = arith.constant 0 : index
    %c0_0 = arith.constant 0 : index
    %0 = vector.load %arg2[%c0, %c0_0] : memref<8x128xf32, #tpu.memory_space<vmem>>, vector<8x128xf32>
    %1 = vector.shape_cast %0 : vector<8x128xf32> to vector<1x8x128xf32>
    %2 = vector.shape_cast %1 : vector<1x8x128xf32> to vector<1x8x128xf32>
    %3 = vector.broadcast %2 : vector<1x8x128xf32> to vector<2x8x128xf32>
    %c0_1 = arith.constant 0 : index
    %c0_2 = arith.constant 0 : index
    %c0_3 = arith.constant 0 : index
    %4 = vector.load %arg3[%c0_1, %c0_2, %c0_3] : memref<2x8x128xf32, #tpu.memory_space<vmem>>, vector<2x8x128xf32>
    tpu.vector_store %arg3[%c0_1, %c0_2, %c0_3], %3 {strides = array<i32>} : memref<2x8x128xf32, #tpu.memory_space<vmem>>, vector<2x8x128xf32>,
    return
  }
  func.func @transform_0(%arg0: i32, %arg1: i32) -> (i32, i32) {
    %c0_i32 = arith.constant 0 : i32
    %c0_i32_0 = arith.constant 0 : i32
    return %arg1, %c0_i32 : i32, i32
  }
  func.func @transform_1(%arg0: i32, %arg1: i32) -> (i32, i32, i32) {
    %c0_i32 = arith.constant 0 : i32
    %c0_i32_0 = arith.constant 0 : i32
    return %arg0, %arg1, %c0_i32 : i32, i32, i32
  }
}

</mosaic_0001>

<llo_original>
// kernel: tpu_custom_call.1
$region0: #{tpu_custom_call.1}
  #allocation0 [shape = 'u32[]', space=smem, size = 0x4, offset = 0x4, fixed_abs, tag = 'smem constant byte address 0x4 - core index']
  #allocation1 [shape = 'u32[144,128]{1,0:T(1,128)}', space=vmem, size = 0x12000, scoped, tag = 'internal scratch']
  %s0 = inlined_call_operand.hbm [shape: f32[8,128], index: 0, kind: input, shape index: {}]
  %s1 = inlined_call_operand.hbm [shape: f32[2,8,128], index: 1, kind: output, shape index: {}]
  %s2 = sld [smem:[#allocation0]]
  $region18: #{tpu_custom_call.1} parent=0
    _
  %s4 = ssub.s32 1, %s2
  %s5 = scalar_select 0, %s4, %s2
  $region1: #{tpu_custom_call.1} parent=0
    #allocation2 [shape = 'u8[4096]{0}', space=vmem, size = 0x1000, scoped, tag = 'input window, operand 0, single buffered']
    #allocation3 [shape = 's32[1]{0}', space=sflag, size = 0x4, scoped, tag = 'scoped memory for tpu_custom_call.1']
    #allocation4 [shape = 's32[1]{0}', space=sflag, size = 0x4, scoped, tag = 'scoped memory for tpu_custom_call.1']
    #allocation5 [shape = 'u8[8192]{0}', space=vmem, size = 0x2000, scoped, tag = 'output window, operand 0, single buffered']
    %6 = vsyncpa [#allocation3], 0
    %7 = vsyncpa [#allocation4], 0
    // Predicated region
    $region2: #{tpu_custom_call.1} parent=1 // pred_check
      _
    $region3: #{tpu_custom_call.1} parent=1 // pred_check_branch
      %9 = sbr.rel (0) target = $region5
    $region4: #{tpu_custom_call.1} parent=1 // pred_region
      %s11 = ssub.s32 128, 128
      %12 = vsyncadd [#allocation3], %s11
      %s14 = sshll.u32 [#allocation2], 4
      %s15 = int_to_ptr.vmem [resolvable:$true] %s14
      %17 = dma.hbm_to_vmem [thread:$0]  %s0, 128, %s15, [#allocation3]
    $region5: #{tpu_custom_call.1} parent=1 // pred_fallthru
      _
    // Predicated region
    $region6: #{tpu_custom_call.1} parent=1 // pred_check
      _
    $region7: #{tpu_custom_call.1} parent=1 // pred_check_branch
      %19 = sbr.rel (0) target = $region9
    $region8: #{tpu_custom_call.1} parent=1 // pred_region
      %20 = dma.done [#allocation3], 128
    $region9: #{tpu_custom_call.1} parent=1 // pred_fallthru
      _
    %v21 = vld [vmem:[#allocation2] sm:$0xff]
    %22 = vst [vmem:[#allocation5] sm:$0xff] %v21
    %23 = vst [vmem:[#allocation5 + $0x8] sm:$0xff] %v21
    // Predicated region
    $region10: #{tpu_custom_call.1} parent=1 // pred_check
      _
    $region11: #{tpu_custom_call.1} parent=1 // pred_check_branch
      %25 = sbr.rel (0) target = $region13
    $region12: #{tpu_custom_call.1} parent=1 // pred_region
      %s27 = ssub.s32 256, 256
      %28 = vsyncadd [#allocation4], %s27
      %s29 = sshll.u32 [#allocation5], 4
      %s30 = int_to_ptr.vmem [resolvable:$true] %s29
      %35 = dma.vmem_to_hbm [thread:$0]  %s30, 256, %s1, [#allocation4], 128, 128, 8
    $region13: #{tpu_custom_call.1} parent=1 // pred_fallthru
      _
    // Predicated region
    $region14: #{tpu_custom_call.1} parent=1 // pred_check
      _
    $region15: #{tpu_custom_call.1} parent=1 // pred_check_branch
      %37 = sbr.rel (0) target = $region17
    $region16: #{tpu_custom_call.1} parent=1 // pred_region
      %38 = dma.done [#allocation4], 256
    $region17: #{tpu_custom_call.1} parent=1 // pred_fallthru
      _
    %39 = vsyncpa [#allocation3], 1
    %40 = vsyncpa [#allocation4], 1

// kernel: tpu_custom_call.1
$region0: #{tpu_custom_call.1}
  #allocation0 [shape = 'u32[]', space=smem, size = 0x4, offset = 0x4, fixed_abs, tag = 'smem constant byte address 0x4 - core index']
  #allocation1 [shape = 'u32[144,128]{1,0:T(1,128)}', space=vmem, size = 0x12000, scoped, tag = 'internal scratch']
  %s0 = inlined_call_operand.hbm [shape: f32[8,128], index: 0, kind: input, shape index: {}]
  %s1 = inlined_call_operand.hbm [shape: f32[2,8,128], index: 1, kind: output, shape index: {}]
  %s2 = sld [smem:[#allocation0]]
  $region18: #{tpu_custom_call.1} parent=0
    _
  %s4 = ssub.s32 1, %s2
  %s5 = scalar_select 0, %s4, %s2
  $region1: #{tpu_custom_call.1} parent=0
    #allocation2 [shape = 'u8[4096]{0}', space=vmem, size = 0x1000, scoped, tag = 'input window, operand 0, single buffered']
    #allocation3 [shape = 's32[1]{0}', space=sflag, size = 0x4, scoped, tag = 'scoped memory for tpu_custom_call.1']
    #allocation4 [shape = 's32[1]{0}', space=sflag, size = 0x4, scoped, tag = 'scoped memory for tpu_custom_call.1']
    #allocation5 [shape = 'u8[8192]{0}', space=vmem, size = 0x2000, scoped, tag = 'output window, operand 0, single buffered']
    %6 = vsyncpa [#allocation3], 0
    %7 = vsyncpa [#allocation4], 0
    // Predicated region
    $region2: #{tpu_custom_call.1} parent=1 // pred_check
      _
    $region3: #{tpu_custom_call.1} parent=1 // pred_check_branch
      %9 = sbr.rel (0) target = $region5
    $region4: #{tpu_custom_call.1} parent=1 // pred_region
      %s11 = ssub.s32 128, 128
      %12 = vsyncadd [#allocation3], %s11
      %s14 = sshll.u32 [#allocation2], 4
      %s15 = int_to_ptr.vmem [resolvable:$true] %s14
      %17 = dma.hbm_to_vmem [thread:$0]  %s0, 128, %s15, [#allocation3]
    $region5: #{tpu_custom_call.1} parent=1 // pred_fallthru
      _
    // Predicated region
    $region6: #{tpu_custom_call.1} parent=1 // pred_check
      _
    $region7: #{tpu_custom_call.1} parent=1 // pred_check_branch
      %19 = sbr.rel (0) target = $region9
    $region8: #{tpu_custom_call.1} parent=1 // pred_region
      %20 = dma.done [#allocation3], 128
    $region9: #{tpu_custom_call.1} parent=1 // pred_fallthru
      _
    %v21 = vld [vmem:[#allocation2] sm:$0xff]
    %22 = vst [vmem:[#allocation5] sm:$0xff] %v21
    %23 = vst [vmem:[#allocation5 + $0x8] sm:$0xff] %v21
    // Predicated region
    $region10: #{tpu_custom_call.1} parent=1 // pred_check
      _
    $region11: #{tpu_custom_call.1} parent=1 // pred_check_branch
      %25 = sbr.rel (0) target = $region13
    $region12: #{tpu_custom_call.1} parent=1 // pred_region
      %s27 = ssub.s32 256, 256
      %28 = vsyncadd [#allocation4], %s27
      %s29 = sshll.u32 [#allocation5], 4
      %s30 = int_to_ptr.vmem [resolvable:$true] %s29
      %35 = dma.vmem_to_hbm [thread:$0]  %s30, 256, %s1, [#allocation4], 128, 128, 8
    $region13: #{tpu_custom_call.1} parent=1 // pred_fallthru
      _
    // Predicated region
    $region14: #{tpu_custom_call.1} parent=1 // pred_check
      _
    $region15: #{tpu_custom_call.1} parent=1 // pred_check_branch
      %37 = sbr.rel (0) target = $region17
    $region16: #{tpu_custom_call.1} parent=1 // pred_region
      %38 = dma.done [#allocation4], 256
    $region17: #{tpu_custom_call.1} parent=1 // pred_fallthru
      _
    %39 = vsyncpa [#allocation3], 1
    %40 = vsyncpa [#allocation4], 1

</llo_original>
